<compile_context>
chip_gen: v7x
topology: tpu7x:2x2x1
jax: 0.10.0
libtpu: 0.0.40
codegen_flags: <defaults>
</compile_context>

<pallas_src>
import functools

import jax
import jax.numpy as jnp
import numpy as np
from jax.experimental import pallas as pl
from jax.experimental.pallas import tpu as pltpu


def _causal_conv_kernel(x_ref, w1_ref, b1_ref, w2_ref, b2_ref, out_ref,
                        *, K, L, L_pad, Bt):
    """One batch-block, NCL layout (channels on sublanes, time on lanes).

    x_ref  : (Bt, C, L)      unpadded input block (model dtype)
    w1_ref : (C, K*C)        conv1 weight, [co, k*Cin + ci] = w1[co, ci, k]
    b1_ref : (C, 1)          f32
    w2_ref : (C, K*C)        conv2 weight (same layout)
    b2_ref : (C, 1)          f32
    out_ref: (Bt, C, L_pad)  lane-dense output block (L_pad % 128 == 0)
    """
    C = out_ref.shape[1]
    pad = K - 1
    L1 = L + pad  # length after the first conv

    w1 = w1_ref[...]
    w2 = w2_ref[...]

    # ---- conv1 as a single matmul (im2col over taps, batch along lanes) ----
    cols = []
    for b in range(Bt):
        xb = x_ref[b]                                              # (C, L)
        # Fused ReplicationPad1d((pad, pad)): edge-column broadcast + lane concat.
        left = jnp.broadcast_to(xb[:, 0:1], (C, pad))
        right = jnp.broadcast_to(xb[:, L - 1:L], (C, pad))
        xpb = jnp.concatenate([left, xb, right], axis=1)           # (C, L + 2*pad)
        taps = [xpb[:, k:k + L1] for k in range(K)]
        cols.append(jnp.concatenate(taps, axis=0))                 # (K*C, L1)
    rhs1 = cols[0] if Bt == 1 else jnp.concatenate(cols, axis=1)   # (K*C, Bt*L1)

    h = jnp.dot(w1, rhs1, preferred_element_type=jnp.float32)      # (C, Bt*L1)
    h = h + b1_ref[...]                                            # bias (f32)
    h = jnp.where(h >= 0, h, 0.01 * h)       # LeakyReLU(0.01); Dropout(0.0) = id
    h = h.astype(x_ref.dtype)                # keep MXU operands in model dtype

    # ---- conv2, same scheme ----
    cols = []
    for b in range(Bt):
        hb = h[:, b * L1:(b + 1) * L1]                             # (C, L1)
        taps = [hb[:, k:k + L] for k in range(K)]
        cols.append(jnp.concatenate(taps, axis=0))                 # (K*C, L)
    rhs2 = cols[0] if Bt == 1 else jnp.concatenate(cols, axis=1)   # (K*C, Bt*L)

    y = jnp.dot(w2, rhs2, preferred_element_type=jnp.float32)      # (C, Bt*L)
    y = jnp.tanh(y + b2_ref[...]).astype(out_ref.dtype)

    # ---- lane-dense stores: full (C, L_pad) rows per batch element ----
    for b in range(Bt):
        yb = y[:, b * L:(b + 1) * L]
        if L_pad != L:
            yb = jnp.concatenate(
                [yb, jnp.zeros((C, L_pad - L), out_ref.dtype)], axis=1)
        out_ref[b] = yb


def causal_conv_block(x, w1, b1, w2, b2):
    """x: [B, C, L] (NCL, as in PyTorch). Weights in PyTorch layout [Cout, Cin, K]."""
    B, C, L = x.shape
    K = w1.shape[2]
    pad = K - 1
    L1 = L + pad
    L_pad = -(-L // 128) * 128                         # lane-dense output width

    # ---- batch-block size: >= ~512 lanes per grid step, VMEM-capped ----
    itemsize = jnp.dtype(x.dtype).itemsize
    per_b = 2 * (C * L + C * L_pad) * itemsize         # double-buffered I/O blocks
    per_b += K * C * (L1 + L) * max(itemsize, 4)       # im2col slabs
    per_b += 4 * C * L1 * 4                            # f32 intermediates
    budget = 24 * 1024 * 1024
    bt = min(B, max(1, -(-512 // max(L, 1))))          # ceil(512 / L) lanes target
    bt = max(1, min(bt, budget // max(per_b, 1)))
    while B % bt:                                      # keep the grid exact
        bt -= 1

    # ---- one-time parameter re-layout (constant-folded under jit) ----
    # [Cout, Cin, K] -> [Cout, K, Cin] -> (Cout, K*Cin) so each conv is one dot.
    w1_f = jnp.transpose(w1, (0, 2, 1)).reshape(C, K * C).astype(x.dtype)
    w2_f = jnp.transpose(w2, (0, 2, 1)).reshape(C, K * C).astype(x.dtype)
    b1_2 = b1.astype(jnp.float32).reshape(C, 1)
    b2_2 = b2.astype(jnp.float32).reshape(C, 1)

    need = bt * per_b + 2 * (C * K * C * itemsize + C * 4)
    vmem_limit = None
    if need > 16 * 1024 * 1024:                        # above ~half the 32 MiB default
        vmem_limit = min(2 * need, 64 * 1024 * 1024)   # stay within v7x physical VMEM

    kernel = functools.partial(_causal_conv_kernel, K=K, L=L, L_pad=L_pad, Bt=bt)

    def call(single_buffer_weights):
        wkw = {"pipeline_mode": pl.Buffered(1)} if single_buffer_weights else {}
        return pl.pallas_call(
            kernel,
            out_shape=jax.ShapeDtypeStruct((B, C, L_pad), x.dtype),
            grid=(B // bt,),
            in_specs=[
                pl.BlockSpec((bt, C, L), lambda i: (i, 0, 0)),       # x (NCL)
                pl.BlockSpec((C, K * C), lambda i: (0, 0), **wkw),   # w1 (grid-invariant)
                pl.BlockSpec((C, 1), lambda i: (0, 0), **wkw),       # b1
                pl.BlockSpec((C, K * C), lambda i: (0, 0), **wkw),   # w2
                pl.BlockSpec((C, 1), lambda i: (0, 0), **wkw),       # b2
            ],
            out_specs=pl.BlockSpec((bt, C, L_pad), lambda i: (i, 0, 0)),
            compiler_params=pltpu.CompilerParams(
                dimension_semantics=("parallel",),
                vmem_limit_bytes=vmem_limit),
        )(x, w1_f, b1_2, w2_f, b2_2)

    try:
        out_padded = call(True)
    except Exception:  # pragma: no cover - JAX build without BlockSpec pipeline_mode
        out_padded = call(False)

    return out_padded if L_pad == L else out_padded[:, :, :L]


def _reference(x, w1, b1, w2, b2):
    """Pure-JAX reference mirroring the PyTorch module."""
    pad = w1.shape[2] - 1
    dn = ("NCH", "OIH", "NCH")
    xp = jnp.pad(x, ((0, 0), (0, 0), (pad, pad)), mode="edge")
    h = jax.lax.conv_general_dilated(xp, w1, (1,), "VALID", dimension_numbers=dn)
    h = h + b1[None, :, None]
    h = jnp.where(h >= 0, h, 0.01 * h)
    y = jax.lax.conv_general_dilated(h, w2, (1,), "VALID", dimension_numbers=dn)
    y = y + b2[None, :, None]
    return jnp.tanh(y)


if __name__ == "__main__":
    B, d_model, L, K = 2, 4, 16, 5

    key = jax.random.PRNGKey(0)
    kx, k1, k2, k3, k4 = jax.random.split(key, 5)

    x = jax.random.normal(kx, (B, d_model, L), dtype=jnp.float32)

    # Deterministic parameter init (PyTorch Conv1d-style uniform fan-in bound).
    bound = 1.0 / np.sqrt(d_model * K)
    w1 = jax.random.uniform(k1, (d_model, d_model, K), jnp.float32, -bound, bound)
    b1 = jax.random.uniform(k2, (d_model,), jnp.float32, -bound, bound)
    w2 = jax.random.uniform(k3, (d_model, d_model, K), jnp.float32, -bound, bound)
    b2 = jax.random.uniform(k4, (d_model,), jnp.float32, -bound, bound)

    out = jax.block_until_ready(causal_conv_block(x, w1, b1, w2, b2))
    ref = jax.block_until_ready(_reference(x, w1, b1, w2, b2))

    assert out.shape == x.shape, (out.shape, x.shape)
    np.testing.assert_allclose(np.asarray(out), np.asarray(ref), rtol=1e-5, atol=1e-5)

    print("KERNEL_OK")
</pallas_src>

<mosaic_0001>
module attributes {stable_mosaic.version = 11 : i64} {
  func.func @_causal_conv_kernel(%arg0: i32, %arg1: memref<2x4x16xf32, #tpu.memory_space<vmem>>, %arg2: memref<4x20xf32, #tpu.memory_space<vmem>>, %arg3: memref<4x1xf32, #tpu.memory_space<vmem>>, %arg4: memref<4x20xf32, #tpu.memory_space<vmem>>, %arg5: memref<4x1xf32, #tpu.memory_space<vmem>>, %arg6: memref<2x4x128xf32, #tpu.memory_space<vmem>>) attributes {dimension_semantics = [#tpu.dimension_semantics<parallel>], iteration_bounds = array<i64: 1>, scalar_prefetch = 0 : i64, scratch_operands = 0 : i64, tpu.core_type = #tpu.core_type<tc>, window_params = [{transform_indices = @transform_0, window_bounds = array<i64: 2, 4, 16>}, {pipeline_mode = #tpu.pipeline_mode<synchronous>, transform_indices = @transform_1, window_bounds = array<i64: 4, 20>}, {pipeline_mode = #tpu.pipeline_mode<synchronous>, transform_indices = @transform_2, window_bounds = array<i64: 4, 1>}, {pipeline_mode = #tpu.pipeline_mode<synchronous>, transform_indices = @transform_3, window_bounds = array<i64: 4, 20>}, {pipeline_mode = #tpu.pipeline_mode<synchronous>, transform_indices = @transform_4, window_bounds = array<i64: 4, 1>}, {transform_indices = @transform_5, window_bounds = array<i64: 2, 4, 128>}]} {
    %c0 = arith.constant 0 : index
    %c0_0 = arith.constant 0 : index
    %0 = vector.load %arg2[%c0, %c0_0] : memref<4x20xf32, #tpu.memory_space<vmem>>, vector<4x20xf32>
    %c0_1 = arith.constant 0 : index
    %c0_2 = arith.constant 0 : index
    %1 = vector.load %arg4[%c0_1, %c0_2] : memref<4x20xf32, #tpu.memory_space<vmem>>, vector<4x20xf32>
    %c0_3 = arith.constant 0 : index
    %c0_4 = arith.constant 0 : index
    %c0_5 = arith.constant 0 : index
    %2 = vector.load %arg1[%c0_3, %c0_4, %c0_5] : memref<2x4x16xf32, #tpu.memory_space<vmem>>, vector<1x4x16xf32>
    %3 = vector.shape_cast %2 : vector<1x4x16xf32> to vector<4x16xf32>
    %4 = vector.extract_strided_slice %3 {offsets = [0, 0], sizes = [4, 1], strides = [1, 1]} : vector<4x16xf32> to vector<4x1xf32>
    %5 = vector.shape_cast %4 : vector<4x1xf32> to vector<4x1xf32>
    %6 = vector.broadcast %5 : vector<4x1xf32> to vector<4x4xf32>
    %7 = vector.extract_strided_slice %3 {offsets = [0, 15], sizes = [4, 1], strides = [1, 1]} : vector<4x16xf32> to vector<4x1xf32>
    %8 = vector.shape_cast %7 : vector<4x1xf32> to vector<4x1xf32>
    %9 = vector.broadcast %8 : vector<4x1xf32> to vector<4x4xf32>
    %10 = tpu.concatenate %6, %3, %9 in 1 : vector<4x4xf32>, vector<4x16xf32>, vector<4x4xf32> -> vector<4x24xf32>
    %11 = vector.extract_strided_slice %10 {offsets = [0, 0], sizes = [4, 20], strides = [1, 1]} : vector<4x24xf32> to vector<4x20xf32>
    %12 = vector.extract_strided_slice %10 {offsets = [0, 1], sizes = [4, 20], strides = [1, 1]} : vector<4x24xf32> to vector<4x20xf32>
    %13 = vector.extract_strided_slice %10 {offsets = [0, 2], sizes = [4, 20], strides = [1, 1]} : vector<4x24xf32> to vector<4x20xf32>
    %14 = vector.extract_strided_slice %10 {offsets = [0, 3], sizes = [4, 20], strides = [1, 1]} : vector<4x24xf32> to vector<4x20xf32>
    %15 = vector.extract_strided_slice %10 {offsets = [0, 4], sizes = [4, 20], strides = [1, 1]} : vector<4x24xf32> to vector<4x20xf32>
    %16 = tpu.concatenate %11, %12, %13, %14, %15 in 0 : vector<4x20xf32>, vector<4x20xf32>, vector<4x20xf32>, vector<4x20xf32>, vector<4x20xf32> -> vector<20x20xf32>
    %c1 = arith.constant 1 : index
    %c0_6 = arith.constant 0 : index
    %c0_7 = arith.constant 0 : index
    %17 = vector.load %arg1[%c1, %c0_6, %c0_7] : memref<2x4x16xf32, #tpu.memory_space<vmem>>, vector<1x4x16xf32>
    %18 = vector.shape_cast %17 : vector<1x4x16xf32> to vector<4x16xf32>
    %19 = vector.extract_strided_slice %18 {offsets = [0, 0], sizes = [4, 1], strides = [1, 1]} : vector<4x16xf32> to vector<4x1xf32>
    %20 = vector.shape_cast %19 : vector<4x1xf32> to vector<4x1xf32>
    %21 = vector.broadcast %20 : vector<4x1xf32> to vector<4x4xf32>
    %22 = vector.extract_strided_slice %18 {offsets = [0, 15], sizes = [4, 1], strides = [1, 1]} : vector<4x16xf32> to vector<4x1xf32>
    %23 = vector.shape_cast %22 : vector<4x1xf32> to vector<4x1xf32>
    %24 = vector.broadcast %23 : vector<4x1xf32> to vector<4x4xf32>
    %25 = tpu.concatenate %21, %18, %24 in 1 : vector<4x4xf32>, vector<4x16xf32>, vector<4x4xf32> -> vector<4x24xf32>
    %26 = vector.extract_strided_slice %25 {offsets = [0, 0], sizes = [4, 20], strides = [1, 1]} : vector<4x24xf32> to vector<4x20xf32>
    %27 = vector.extract_strided_slice %25 {offsets = [0, 1], sizes = [4, 20], strides = [1, 1]} : vector<4x24xf32> to vector<4x20xf32>
    %28 = vector.extract_strided_slice %25 {offsets = [0, 2], sizes = [4, 20], strides = [1, 1]} : vector<4x24xf32> to vector<4x20xf32>
    %29 = vector.extract_strided_slice %25 {offsets = [0, 3], sizes = [4, 20], strides = [1, 1]} : vector<4x24xf32> to vector<4x20xf32>
    %30 = vector.extract_strided_slice %25 {offsets = [0, 4], sizes = [4, 20], strides = [1, 1]} : vector<4x24xf32> to vector<4x20xf32>
    %31 = tpu.concatenate %26, %27, %28, %29, %30 in 0 : vector<4x20xf32>, vector<4x20xf32>, vector<4x20xf32>, vector<4x20xf32>, vector<4x20xf32> -> vector<20x20xf32>
    %32 = tpu.concatenate %16, %31 in 1 : vector<20x20xf32>, vector<20x20xf32> -> vector<20x40xf32>
    %cst = arith.constant dense<0.000000e+00> : vector<4x40xf32>
    %33 = tpu.matmul %0, %32, %cst {dimension_numbers = #tpu.dot_dimension_numbers<[1], [0], [0], [1], [0, 0, 1, 1], [], []>} : vector<4x20xf32>, vector<20x40xf32>, vector<4x40xf32> -> vector<4x40xf32>
    %c0_8 = arith.constant 0 : index
    %c0_9 = arith.constant 0 : index
    %34 = vector.load %arg3[%c0_8, %c0_9] : memref<4x1xf32, #tpu.memory_space<vmem>>, vector<4x1xf32>
    %35 = vector.broadcast %34 : vector<4x1xf32> to vector<4x40xf32>
    %36 = arith.addf %33, %35 : vector<4x40xf32>
    %cst_10 = arith.constant 0.000000e+00 : f32
    %37 = vector.broadcast %cst_10 : f32 to vector<4x40xf32>
    %38 = arith.cmpf oge, %36, %37 : vector<4x40xf32>
    %cst_11 = arith.constant 0.00999999977 : f32
    %39 = vector.broadcast %cst_11 : f32 to vector<4x40xf32>
    %40 = arith.mulf %39, %36 : vector<4x40xf32>
    %41 = arith.select %38, %36, %40 : vector<4x40xi1>, vector<4x40xf32>
    %42 = vector.extract_strided_slice %41 {offsets = [0, 0], sizes = [4, 20], strides = [1, 1]} : vector<4x40xf32> to vector<4x20xf32>
    %43 = vector.extract_strided_slice %42 {offsets = [0, 0], sizes = [4, 16], strides = [1, 1]} : vector<4x20xf32> to vector<4x16xf32>
    %44 = vector.extract_strided_slice %42 {offsets = [0, 1], sizes = [4, 16], strides = [1, 1]} : vector<4x20xf32> to vector<4x16xf32>
    %45 = vector.extract_strided_slice %42 {offsets = [0, 2], sizes = [4, 16], strides = [1, 1]} : vector<4x20xf32> to vector<4x16xf32>
    %46 = vector.extract_strided_slice %42 {offsets = [0, 3], sizes = [4, 16], strides = [1, 1]} : vector<4x20xf32> to vector<4x16xf32>
    %47 = vector.extract_strided_slice %42 {offsets = [0, 4], sizes = [4, 16], strides = [1, 1]} : vector<4x20xf32> to vector<4x16xf32>
    %48 = tpu.concatenate %43, %44, %45, %46, %47 in 0 : vector<4x16xf32>, vector<4x16xf32>, vector<4x16xf32>, vector<4x16xf32>, vector<4x16xf32> -> vector<20x16xf32>
    %49 = vector.extract_strided_slice %41 {offsets = [0, 20], sizes = [4, 20], strides = [1, 1]} : vector<4x40xf32> to vector<4x20xf32>
    %50 = vector.extract_strided_slice %49 {offsets = [0, 0], sizes = [4, 16], strides = [1, 1]} : vector<4x20xf32> to vector<4x16xf32>
    %51 = vector.extract_strided_slice %49 {offsets = [0, 1], sizes = [4, 16], strides = [1, 1]} : vector<4x20xf32> to vector<4x16xf32>
    %52 = vector.extract_strided_slice %49 {offsets = [0, 2], sizes = [4, 16], strides = [1, 1]} : vector<4x20xf32> to vector<4x16xf32>
    %53 = vector.extract_strided_slice %49 {offsets = [0, 3], sizes = [4, 16], strides = [1, 1]} : vector<4x20xf32> to vector<4x16xf32>
    %54 = vector.extract_strided_slice %49 {offsets = [0, 4], sizes = [4, 16], strides = [1, 1]} : vector<4x20xf32> to vector<4x16xf32>
    %55 = tpu.concatenate %50, %51, %52, %53, %54 in 0 : vector<4x16xf32>, vector<4x16xf32>, vector<4x16xf32>, vector<4x16xf32>, vector<4x16xf32> -> vector<20x16xf32>
    %56 = tpu.concatenate %48, %55 in 1 : vector<20x16xf32>, vector<20x16xf32> -> vector<20x32xf32>
    %cst_12 = arith.constant dense<0.000000e+00> : vector<4x32xf32>
    %57 = tpu.matmul %1, %56, %cst_12 {dimension_numbers = #tpu.dot_dimension_numbers<[1], [0], [0], [1], [0, 0, 1, 1], [], []>} : vector<4x20xf32>, vector<20x32xf32>, vector<4x32xf32> -> vector<4x32xf32>
    %c0_13 = arith.constant 0 : index
    %c0_14 = arith.constant 0 : index
    %58 = vector.load %arg5[%c0_13, %c0_14] : memref<4x1xf32, #tpu.memory_space<vmem>>, vector<4x1xf32>
    %59 = vector.broadcast %58 : vector<4x1xf32> to vector<4x32xf32>
    %60 = arith.addf %57, %59 : vector<4x32xf32>
    %61 = math.tanh %60 : vector<4x32xf32>
    %62 = vector.extract_strided_slice %61 {offsets = [0, 0], sizes = [4, 16], strides = [1, 1]} : vector<4x32xf32> to vector<4x16xf32>
    %cst_15 = arith.constant 0.000000e+00 : f32
    %63 = vector.broadcast %cst_15 : f32 to vector<4x112xf32>
    %64 = tpu.concatenate %62, %63 in 1 : vector<4x16xf32>, vector<4x112xf32> -> vector<4x128xf32>
    %c0_16 = arith.constant 0 : index
    %c0_17 = arith.constant 0 : index
    %c0_18 = arith.constant 0 : index
    %65 = vector.load %arg6[%c0_16, %c0_17, %c0_18] : memref<2x4x128xf32, #tpu.memory_space<vmem>>, vector<1x4x128xf32>
    %66 = vector.shape_cast %65 : vector<1x4x128xf32> to vector<4x128xf32>
    %67 = vector.shape_cast %64 : vector<4x128xf32> to vector<1x4x128xf32>
    tpu.vector_store %arg6[%c0_16, %c0_17, %c0_18], %67 {strides = array<i32>} : memref<2x4x128xf32, #tpu.memory_space<vmem>>, vector<1x4x128xf32>,
    %68 = vector.extract_strided_slice %61 {offsets = [0, 16], sizes = [4, 16], strides = [1, 1]} : vector<4x32xf32> to vector<4x16xf32>
    %cst_19 = arith.constant 0.000000e+00 : f32
    %69 = vector.broadcast %cst_19 : f32 to vector<4x112xf32>
    %70 = tpu.concatenate %68, %69 in 1 : vector<4x16xf32>, vector<4x112xf32> -> vector<4x128xf32>
    %c1_20 = arith.constant 1 : index
    %c0_21 = arith.constant 0 : index
    %c0_22 = arith.constant 0 : index
    %71 = vector.load %arg6[%c1_20, %c0_21, %c0_22] : memref<2x4x128xf32, #tpu.memory_space<vmem>>, vector<1x4x128xf32>
    %72 = vector.shape_cast %71 : vector<1x4x128xf32> to vector<4x128xf32>
    %73 = vector.shape_cast %70 : vector<4x128xf32> to vector<1x4x128xf32>
    tpu.vector_store %arg6[%c1_20, %c0_21, %c0_22], %73 {strides = array<i32>} : memref<2x4x128xf32, #tpu.memory_space<vmem>>, vector<1x4x128xf32>,
    return
  }
  func.func @transform_0(%arg0: i32) -> (i32, i32, i32) {
    %c0_i32 = arith.constant 0 : i32
    %c0_i32_0 = arith.constant 0 : i32
    %c0_i32_1 = arith.constant 0 : i32
    return %arg0, %c0_i32, %c0_i32_0 : i32, i32, i32
  }
  func.func @transform_1(%arg0: i32) -> (i32, i32) {
    %c0_i32 = arith.constant 0 : i32
    %c0_i32_0 = arith.constant 0 : i32
    %c0_i32_1 = arith.constant 0 : i32
    return %c0_i32, %c0_i32_0 : i32, i32
  }
  func.func @transform_2(%arg0: i32) -> (i32, i32) {
    %c0_i32 = arith.constant 0 : i32
    %c0_i32_0 = arith.constant 0 : i32
    %c0_i32_1 = arith.constant 0 : i32
    return %c0_i32, %c0_i32_0 : i32, i32
  }
  func.func @transform_3(%arg0: i32) -> (i32, i32) {
    %c0_i32 = arith.constant 0 : i32
    %c0_i32_0 = arith.constant 0 : i32
    %c0_i32_1 = arith.constant 0 : i32
    return %c0_i32, %c0_i32_0 : i32, i32
  }
  func.func @transform_4(%arg0: i32) -> (i32, i32) {
    %c0_i32 = arith.constant 0 : i32
    %c0_i32_0 = arith.constant 0 : i32
    %c0_i32_1 = arith.constant 0 : i32
    return %c0_i32, %c0_i32_0 : i32, i32
  }
  func.func @transform_5(%arg0: i32) -> (i32, i32, i32) {
    %c0_i32 = arith.constant 0 : i32
    %c0_i32_0 = arith.constant 0 : i32
    %c0_i32_1 = arith.constant 0 : i32
    return %arg0, %c0_i32, %c0_i32_0 : i32, i32, i32
  }
}

module attributes {stable_mosaic.version = 11 : i64} {
  func.func @_causal_conv_kernel(%arg0: i32, %arg1: memref<2x4x16xf32, #tpu.memory_space<vmem>>, %arg2: memref<4x20xf32, #tpu.memory_space<vmem>>, %arg3: memref<4x1xf32, #tpu.memory_space<vmem>>, %arg4: memref<4x20xf32, #tpu.memory_space<vmem>>, %arg5: memref<4x1xf32, #tpu.memory_space<vmem>>, %arg6: memref<2x4x128xf32, #tpu.memory_space<vmem>>) attributes {dimension_semantics = [#tpu.dimension_semantics<parallel>], iteration_bounds = array<i64: 1>, scalar_prefetch = 0 : i64, scratch_operands = 0 : i64, tpu.core_type = #tpu.core_type<tc>, window_params = [{transform_indices = @transform_0, window_bounds = array<i64: 2, 4, 16>}, {pipeline_mode = #tpu.pipeline_mode<synchronous>, transform_indices = @transform_1, window_bounds = array<i64: 4, 20>}, {pipeline_mode = #tpu.pipeline_mode<synchronous>, transform_indices = @transform_2, window_bounds = array<i64: 4, 1>}, {pipeline_mode = #tpu.pipeline_mode<synchronous>, transform_indices = @transform_3, window_bounds = array<i64: 4, 20>}, {pipeline_mode = #tpu.pipeline_mode<synchronous>, transform_indices = @transform_4, window_bounds = array<i64: 4, 1>}, {transform_indices = @transform_5, window_bounds = array<i64: 2, 4, 128>}]} {
    %c0 = arith.constant 0 : index
    %c0_0 = arith.constant 0 : index
    %0 = vector.load %arg2[%c0, %c0_0] : memref<4x20xf32, #tpu.memory_space<vmem>>, vector<4x20xf32>
    %c0_1 = arith.constant 0 : index
    %c0_2 = arith.constant 0 : index
    %1 = vector.load %arg4[%c0_1, %c0_2] : memref<4x20xf32, #tpu.memory_space<vmem>>, vector<4x20xf32>
    %c0_3 = arith.constant 0 : index
    %c0_4 = arith.constant 0 : index
    %c0_5 = arith.constant 0 : index
    %2 = vector.load %arg1[%c0_3, %c0_4, %c0_5] : memref<2x4x16xf32, #tpu.memory_space<vmem>>, vector<1x4x16xf32>
    %3 = vector.shape_cast %2 : vector<1x4x16xf32> to vector<4x16xf32>
    %4 = vector.extract_strided_slice %3 {offsets = [0, 0], sizes = [4, 1], strides = [1, 1]} : vector<4x16xf32> to vector<4x1xf32>
    %5 = vector.shape_cast %4 : vector<4x1xf32> to vector<4x1xf32>
    %6 = vector.broadcast %5 : vector<4x1xf32> to vector<4x4xf32>
    %7 = vector.extract_strided_slice %3 {offsets = [0, 15], sizes = [4, 1], strides = [1, 1]} : vector<4x16xf32> to vector<4x1xf32>
    %8 = vector.shape_cast %7 : vector<4x1xf32> to vector<4x1xf32>
    %9 = vector.broadcast %8 : vector<4x1xf32> to vector<4x4xf32>
    %10 = tpu.concatenate %6, %3, %9 in 1 : vector<4x4xf32>, vector<4x16xf32>, vector<4x4xf32> -> vector<4x24xf32>
    %11 = vector.extract_strided_slice %10 {offsets = [0, 0], sizes = [4, 20], strides = [1, 1]} : vector<4x24xf32> to vector<4x20xf32>
    %12 = vector.extract_strided_slice %10 {offsets = [0, 1], sizes = [4, 20], strides = [1, 1]} : vector<4x24xf32> to vector<4x20xf32>
    %13 = vector.extract_strided_slice %10 {offsets = [0, 2], sizes = [4, 20], strides = [1, 1]} : vector<4x24xf32> to vector<4x20xf32>
    %14 = vector.extract_strided_slice %10 {offsets = [0, 3], sizes = [4, 20], strides = [1, 1]} : vector<4x24xf32> to vector<4x20xf32>
    %15 = vector.extract_strided_slice %10 {offsets = [0, 4], sizes = [4, 20], strides = [1, 1]} : vector<4x24xf32> to vector<4x20xf32>
    %16 = tpu.concatenate %11, %12, %13, %14, %15 in 0 : vector<4x20xf32>, vector<4x20xf32>, vector<4x20xf32>, vector<4x20xf32>, vector<4x20xf32> -> vector<20x20xf32>
    %c1 = arith.constant 1 : index
    %c0_6 = arith.constant 0 : index
    %c0_7 = arith.constant 0 : index
    %17 = vector.load %arg1[%c1, %c0_6, %c0_7] : memref<2x4x16xf32, #tpu.memory_space<vmem>>, vector<1x4x16xf32>
    %18 = vector.shape_cast %17 : vector<1x4x16xf32> to vector<4x16xf32>
    %19 = vector.extract_strided_slice %18 {offsets = [0, 0], sizes = [4, 1], strides = [1, 1]} : vector<4x16xf32> to vector<4x1xf32>
    %20 = vector.shape_cast %19 : vector<4x1xf32> to vector<4x1xf32>
    %21 = vector.broadcast %20 : vector<4x1xf32> to vector<4x4xf32>
    %22 = vector.extract_strided_slice %18 {offsets = [0, 15], sizes = [4, 1], strides = [1, 1]} : vector<4x16xf32> to vector<4x1xf32>
    %23 = vector.shape_cast %22 : vector<4x1xf32> to vector<4x1xf32>
    %24 = vector.broadcast %23 : vector<4x1xf32> to vector<4x4xf32>
    %25 = tpu.concatenate %21, %18, %24 in 1 : vector<4x4xf32>, vector<4x16xf32>, vector<4x4xf32> -> vector<4x24xf32>
    %26 = vector.extract_strided_slice %25 {offsets = [0, 0], sizes = [4, 20], strides = [1, 1]} : vector<4x24xf32> to vector<4x20xf32>
    %27 = vector.extract_strided_slice %25 {offsets = [0, 1], sizes = [4, 20], strides = [1, 1]} : vector<4x24xf32> to vector<4x20xf32>
    %28 = vector.extract_strided_slice %25 {offsets = [0, 2], sizes = [4, 20], strides = [1, 1]} : vector<4x24xf32> to vector<4x20xf32>
    %29 = vector.extract_strided_slice %25 {offsets = [0, 3], sizes = [4, 20], strides = [1, 1]} : vector<4x24xf32> to vector<4x20xf32>
    %30 = vector.extract_strided_slice %25 {offsets = [0, 4], sizes = [4, 20], strides = [1, 1]} : vector<4x24xf32> to vector<4x20xf32>
    %31 = tpu.concatenate %26, %27, %28, %29, %30 in 0 : vector<4x20xf32>, vector<4x20xf32>, vector<4x20xf32>, vector<4x20xf32>, vector<4x20xf32> -> vector<20x20xf32>
    %32 = tpu.concatenate %16, %31 in 1 : vector<20x20xf32>, vector<20x20xf32> -> vector<20x40xf32>
    %cst = arith.constant dense<0.000000e+00> : vector<4x40xf32>
    %33 = tpu.matmul %0, %32, %cst {dimension_numbers = #tpu.dot_dimension_numbers<[1], [0], [0], [1], [0, 0, 1, 1], [], []>} : vector<4x20xf32>, vector<20x40xf32>, vector<4x40xf32> -> vector<4x40xf32>
    %c0_8 = arith.constant 0 : index
    %c0_9 = arith.constant 0 : index
    %34 = vector.load %arg3[%c0_8, %c0_9] : memref<4x1xf32, #tpu.memory_space<vmem>>, vector<4x1xf32>
    %35 = vector.broadcast %34 : vector<4x1xf32> to vector<4x40xf32>
    %36 = arith.addf %33, %35 : vector<4x40xf32>
    %cst_10 = arith.constant 0.000000e+00 : f32
    %37 = vector.broadcast %cst_10 : f32 to vector<4x40xf32>
    %38 = arith.cmpf oge, %36, %37 : vector<4x40xf32>
    %cst_11 = arith.constant 0.00999999977 : f32
    %39 = vector.broadcast %cst_11 : f32 to vector<4x40xf32>
    %40 = arith.mulf %39, %36 : vector<4x40xf32>
    %41 = arith.select %38, %36, %40 : vector<4x40xi1>, vector<4x40xf32>
    %42 = vector.extract_strided_slice %41 {offsets = [0, 0], sizes = [4, 20], strides = [1, 1]} : vector<4x40xf32> to vector<4x20xf32>
    %43 = vector.extract_strided_slice %42 {offsets = [0, 0], sizes = [4, 16], strides = [1, 1]} : vector<4x20xf32> to vector<4x16xf32>
    %44 = vector.extract_strided_slice %42 {offsets = [0, 1], sizes = [4, 16], strides = [1, 1]} : vector<4x20xf32> to vector<4x16xf32>
    %45 = vector.extract_strided_slice %42 {offsets = [0, 2], sizes = [4, 16], strides = [1, 1]} : vector<4x20xf32> to vector<4x16xf32>
    %46 = vector.extract_strided_slice %42 {offsets = [0, 3], sizes = [4, 16], strides = [1, 1]} : vector<4x20xf32> to vector<4x16xf32>
    %47 = vector.extract_strided_slice %42 {offsets = [0, 4], sizes = [4, 16], strides = [1, 1]} : vector<4x20xf32> to vector<4x16xf32>
    %48 = tpu.concatenate %43, %44, %45, %46, %47 in 0 : vector<4x16xf32>, vector<4x16xf32>, vector<4x16xf32>, vector<4x16xf32>, vector<4x16xf32> -> vector<20x16xf32>
    %49 = vector.extract_strided_slice %41 {offsets = [0, 20], sizes = [4, 20], strides = [1, 1]} : vector<4x40xf32> to vector<4x20xf32>
    %50 = vector.extract_strided_slice %49 {offsets = [0, 0], sizes = [4, 16], strides = [1, 1]} : vector<4x20xf32> to vector<4x16xf32>
    %51 = vector.extract_strided_slice %49 {offsets = [0, 1], sizes = [4, 16], strides = [1, 1]} : vector<4x20xf32> to vector<4x16xf32>
    %52 = vector.extract_strided_slice %49 {offsets = [0, 2], sizes = [4, 16], strides = [1, 1]} : vector<4x20xf32> to vector<4x16xf32>
    %53 = vector.extract_strided_slice %49 {offsets = [0, 3], sizes = [4, 16], strides = [1, 1]} : vector<4x20xf32> to vector<4x16xf32>
    %54 = vector.extract_strided_slice %49 {offsets = [0, 4], sizes = [4, 16], strides = [1, 1]} : vector<4x20xf32> to vector<4x16xf32>
    %55 = tpu.concatenate %50, %51, %52, %53, %54 in 0 : vector<4x16xf32>, vector<4x16xf32>, vector<4x16xf32>, vector<4x16xf32>, vector<4x16xf32> -> vector<20x16xf32>
    %56 = tpu.concatenate %48, %55 in 1 : vector<20x16xf32>, vector<20x16xf32> -> vector<20x32xf32>
    %cst_12 = arith.constant dense<0.000000e+00> : vector<4x32xf32>
    %57 = tpu.matmul %1, %56, %cst_12 {dimension_numbers = #tpu.dot_dimension_numbers<[1], [0], [0], [1], [0, 0, 1, 1], [], []>} : vector<4x20xf32>, vector<20x32xf32>, vector<4x32xf32> -> vector<4x32xf32>
    %c0_13 = arith.constant 0 : index
    %c0_14 = arith.constant 0 : index
    %58 = vector.load %arg5[%c0_13, %c0_14] : memref<4x1xf32, #tpu.memory_space<vmem>>, vector<4x1xf32>
    %59 = vector.broadcast %58 : vector<4x1xf32> to vector<4x32xf32>
    %60 = arith.addf %57, %59 : vector<4x32xf32>
    %61 = math.tanh %60 : vector<4x32xf32>
    %62 = vector.extract_strided_slice %61 {offsets = [0, 0], sizes = [4, 16], strides = [1, 1]} : vector<4x32xf32> to vector<4x16xf32>
    %cst_15 = arith.constant 0.000000e+00 : f32
    %63 = vector.broadcast %cst_15 : f32 to vector<4x112xf32>
    %64 = tpu.concatenate %62, %63 in 1 : vector<4x16xf32>, vector<4x112xf32> -> vector<4x128xf32>
    %c0_16 = arith.constant 0 : index
    %c0_17 = arith.constant 0 : index
    %c0_18 = arith.constant 0 : index
    %65 = vector.load %arg6[%c0_16, %c0_17, %c0_18] : memref<2x4x128xf32, #tpu.memory_space<vmem>>, vector<1x4x128xf32>
    %66 = vector.shape_cast %65 : vector<1x4x128xf32> to vector<4x128xf32>
    %67 = vector.shape_cast %64 : vector<4x128xf32> to vector<1x4x128xf32>
    tpu.vector_store %arg6[%c0_16, %c0_17, %c0_18], %67 {strides = array<i32>} : memref<2x4x128xf32, #tpu.memory_space<vmem>>, vector<1x4x128xf32>,
    %68 = vector.extract_strided_slice %61 {offsets = [0, 16], sizes = [4, 16], strides = [1, 1]} : vector<4x32xf32> to vector<4x16xf32>
    %cst_19 = arith.constant 0.000000e+00 : f32
    %69 = vector.broadcast %cst_19 : f32 to vector<4x112xf32>
    %70 = tpu.concatenate %68, %69 in 1 : vector<4x16xf32>, vector<4x112xf32> -> vector<4x128xf32>
    %c1_20 = arith.constant 1 : index
    %c0_21 = arith.constant 0 : index
    %c0_22 = arith.constant 0 : index
    %71 = vector.load %arg6[%c1_20, %c0_21, %c0_22] : memref<2x4x128xf32, #tpu.memory_space<vmem>>, vector<1x4x128xf32>
    %72 = vector.shape_cast %71 : vector<1x4x128xf32> to vector<4x128xf32>
    %73 = vector.shape_cast %70 : vector<4x128xf32> to vector<1x4x128xf32>
    tpu.vector_store %arg6[%c1_20, %c0_21, %c0_22], %73 {strides = array<i32>} : memref<2x4x128xf32, #tpu.memory_space<vmem>>, vector<1x4x128xf32>,
    return
  }
  func.func @transform_0(%arg0: i32) -> (i32, i32, i32) {
    %c0_i32 = arith.constant 0 : i32
    %c0_i32_0 = arith.constant 0 : i32
    %c0_i32_1 = arith.constant 0 : i32
    return %arg0, %c0_i32, %c0_i32_0 : i32, i32, i32
  }
  func.func @transform_1(%arg0: i32) -> (i32, i32) {
    %c0_i32 = arith.constant 0 : i32
    %c0_i32_0 = arith.constant 0 : i32
    %c0_i32_1 = arith.constant 0 : i32
    return %c0_i32, %c0_i32_0 : i32, i32
  }
  func.func @transform_2(%arg0: i32) -> (i32, i32) {
    %c0_i32 = arith.constant 0 : i32
    %c0_i32_0 = arith.constant 0 : i32
    %c0_i32_1 = arith.constant 0 : i32
    return %c0_i32, %c0_i32_0 : i32, i32
  }
  func.func @transform_3(%arg0: i32) -> (i32, i32) {
    %c0_i32 = arith.constant 0 : i32
    %c0_i32_0 = arith.constant 0 : i32
    %c0_i32_1 = arith.constant 0 : i32
    return %c0_i32, %c0_i32_0 : i32, i32
  }
  func.func @transform_4(%arg0: i32) -> (i32, i32) {
    %c0_i32 = arith.constant 0 : i32
    %c0_i32_0 = arith.constant 0 : i32
    %c0_i32_1 = arith.constant 0 : i32
    return %c0_i32, %c0_i32_0 : i32, i32
  }
  func.func @transform_5(%arg0: i32) -> (i32, i32, i32) {
    %c0_i32 = arith.constant 0 : i32
    %c0_i32_0 = arith.constant 0 : i32
    %c0_i32_1 = arith.constant 0 : i32
    return %arg0, %c0_i32, %c0_i32_0 : i32, i32, i32
  }
}

</mosaic_0001>

<llo_original>
// kernel: tpu_custom_call.1
$region0: #{tpu_custom_call.1}
  #allocation0 [shape = 'u32[]', space=smem, size = 0x4, offset = 0x4, fixed_abs, tag = 'smem constant byte address 0x4 - core index']
  #allocation1 [shape = 'u32[144,128]{1,0:T(1,128)}', space=vmem, size = 0x12000, scoped, tag = 'internal scratch']
  %s0 = inlined_call_operand.vmem [shape: f32[2,4,16], index: 0, kind: input, shape index: {}]
  %s1 = inlined_call_operand.vmem [shape: f32[4,20], index: 1, kind: input, shape index: {}]
  %s2 = inlined_call_operand.vmem [shape: f32[4,1], index: 2, kind: input, shape index: {}]
  %s3 = inlined_call_operand.vmem [shape: f32[4,20], index: 3, kind: input, shape index: {}]
  %s4 = inlined_call_operand.vmem [shape: f32[4,1], index: 4, kind: input, shape index: {}]
  %s5 = inlined_call_operand.hbm [shape: f32[2,4,128], index: 5, kind: output, shape index: {}]
  %s6 = sld [smem:[#allocation0]]
  $region30: #{tpu_custom_call.1} parent=0
    _
  %s8 = ssub.s32 1, %s6
  %s9 = scalar_select 0, %s8, %s6
  $region1: #{tpu_custom_call.1} parent=0
    #allocation2 [shape = 'u8[4096]{0}', space=vmem, size = 0x1000, scoped, tag = 'output window, operand 0, single buffered']
    #allocation3 [shape = 's32[1]{0}', space=sflag, size = 0x4, scoped, tag = 'scoped memory for tpu_custom_call.1']
    %10 = vsyncpa [#allocation3], 0
    // Predicated region
    $region2: #{tpu_custom_call.1} parent=1 // pred_check
      _
    $region3: #{tpu_custom_call.1} parent=1 // pred_check_branch
      %12 = sbr.rel (0) target = $region5
    $region4: #{tpu_custom_call.1} parent=1 // pred_region
      _
    $region5: #{tpu_custom_call.1} parent=1 // pred_fallthru
      _
    // Predicated region
    $region6: #{tpu_custom_call.1} parent=1 // pred_check
      _
    $region7: #{tpu_custom_call.1} parent=1 // pred_check_branch
      %14 = sbr.rel (0) target = $region9
    $region8: #{tpu_custom_call.1} parent=1 // pred_region
      _
    $region9: #{tpu_custom_call.1} parent=1 // pred_fallthru
      _
    // Predicated region
    $region10: #{tpu_custom_call.1} parent=1 // pred_check
      _
    $region11: #{tpu_custom_call.1} parent=1 // pred_check_branch
      %16 = sbr.rel (0) target = $region13
    $region12: #{tpu_custom_call.1} parent=1 // pred_region
      _
    $region13: #{tpu_custom_call.1} parent=1 // pred_fallthru
      _
    // Predicated region
    $region14: #{tpu_custom_call.1} parent=1 // pred_check
      _
    $region15: #{tpu_custom_call.1} parent=1 // pred_check_branch
      %18 = sbr.rel (0) target = $region17
    $region16: #{tpu_custom_call.1} parent=1 // pred_region
      _
    $region17: #{tpu_custom_call.1} parent=1 // pred_fallthru
      _
    // Predicated region
    $region18: #{tpu_custom_call.1} parent=1 // pred_check
      _
    $region19: #{tpu_custom_call.1} parent=1 // pred_check_branch
      %20 = sbr.rel (0) target = $region21
    $region20: #{tpu_custom_call.1} parent=1 // pred_region
      _
    $region21: #{tpu_custom_call.1} parent=1 // pred_fallthru
      _
    %v21 = vld [vmem:[%s1] sm:$0xf]
    %v22 = vld [vmem:[%s3] sm:$0xf]
    %v23 = vld [vmem:[%s0] sm:$0xf]
    %25 = vset.pattern.permute.xlu0 0
    %26 = vperm.xlu0 %25, %v23
    %v27 = vpop.permute.xlu0 %26
    %29 = vset.pattern.permute.xlu0 15
    %30 = vperm.xlu0 %29, %v23
    %v31 = vpop.permute.xlu0 %30
    %33 = vrot.lane.b32.xlu0 %v23, 4
    %v34 = vpop.permute.xlu0 %33
    %vm36 = vcmask 31744
    %v37 = vsel %vm36, %v27, %v34
    %vm38 = vcmask 162816
    %v39 = vsel %vm38, %v37, %v31
    %v41 = vrot.slane %v39, 4
    %42 = vrot.lane.b32.xlu0 %v41, 127
    %v43 = vpop.permute.xlu0 %42
    %45 = vrot.lane.b32.xlu0 %v39, 126
    %v46 = vpop.permute.xlu0 %45
    %48 = vrot.lane.b32.xlu0 %v41, 125
    %v49 = vpop.permute.xlu0 %48
    %51 = vrot.lane.b32.xlu0 %v39, 124
    %v52 = vpop.permute.xlu0 %51
    %vm54 = vcmask 1043456
    %v55 = vsel %vm54, %v39, %v43
    %v56 = vsel %vm54, %v46, %v49
    %s57 = scalar_lea.vmem %s0, 4
    %v58 = vld [vmem:[%s57] sm:$0xf]
    %60 = vset.pattern.permute.xlu0 0
    %61 = vperm.xlu0 %60, %v58
    %v62 = vpop.permute.xlu0 %61
    %64 = vset.pattern.permute.xlu0 15
    %65 = vperm.xlu0 %64, %v58
    %v66 = vpop.permute.xlu0 %65
    %68 = vrot.lane.b32.xlu0 %v58, 4
    %v69 = vpop.permute.xlu0 %68
    %v71 = vsel %vm36, %v62, %v69
    %v72 = vsel %vm38, %v71, %v66
    %v74 = vrot.slane %v72, 4
    %75 = vrot.lane.b32.xlu0 %v74, 127
    %v76 = vpop.permute.xlu0 %75
    %78 = vrot.lane.b32.xlu0 %v72, 126
    %v79 = vpop.permute.xlu0 %78
    %81 = vrot.lane.b32.xlu0 %v74, 125
    %v82 = vpop.permute.xlu0 %81
    %84 = vrot.lane.b32.xlu0 %v72, 124
    %v85 = vpop.permute.xlu0 %84
    %v86 = vsel %vm54, %v72, %v76
    %v87 = vsel %vm54, %v79, %v82
    %90 = vrot.lane.b32.xlu0 %v86, 20
    %v91 = vpop.permute.xlu0 %90
    %92 = vrot.lane.b32.xlu0 %v87, 20
    %v93 = vpop.permute.xlu0 %92
    %94 = vrot.lane.b32.xlu0 %v85, 20
    %v95 = vpop.permute.xlu0 %94
    %v99 = vsel %vm38, %v55, %v91
    %v100 = vsel %vm38, %v56, %v93
    %v101 = vsel %vm38, %v52, %v95
    %v102 = vld [vmem:[%s2] sm:$0xf]
    %104 = vset.pattern.permute.xlu0 0
    %105 = vperm.xlu0 %104, %v102
    %v106 = vpop.permute.xlu0 %105
    %v109 = vsel %vm38, %v21, 0
    %v112 = vsel %vm54, %v101, 0
    %114 = vmatprep.subr.mxu0 0.0
    %115 = vmatpush1.msra.mxu0 %v99
    %116 = vmatprep.subr.mxu0 0.0
    %117 = vmatpush1.msra.mxu0 %v100
    %118 = vmatprep.subr.mxu0 0.0
    %119 = vmatpush1.msra.mxu0 %v112
    %120 = vmatprep.subr.mxu0 0.0
    %121 = vmatpush1.msra.mxu0 0.0
    %122 = vmatprep.subr.mxu0 0.0
    %123 = vmatpush1.msra.mxu0 0.0
    %124 = vmatprep.subr.mxu0 0.0
    %125 = vmatpush1.msra.mxu0 0.0
    %126 = vmatprep.subr.mxu0 0.0
    %127 = vmatpush1.msra.mxu0 0.0
    %128 = vmatprep.subr.mxu0 0.0
    %129 = vmatpush1.msra.mxu0 0.0
    %130 = vmatprep.subr.mxu0 0.0
    %131 = vmatpush1.msra.mxu0 0.0
    %132 = vmatprep.subr.mxu0 0.0
    %133 = vmatpush1.msra.mxu0 0.0
    %134 = vmatprep.subr.mxu0 0.0
    %135 = vmatpush1.msra.mxu0 0.0
    %136 = vmatprep.subr.mxu0 0.0
    %137 = vmatpush1.msra.mxu0 0.0
    %138 = vmatprep.subr.mxu0 0.0
    %139 = vmatpush1.msra.mxu0 0.0
    %140 = vmatprep.subr.mxu0 0.0
    %141 = vmatpush1.msra.mxu0 0.0
    %142 = vmatprep.subr.mxu0 0.0
    %143 = vmatpush1.msra.mxu0 0.0
    %144 = vmatprep.subr.mxu0 0.0
    %145 = vmatpush1.msra.mxu0 0.0
    %146 = vmatprep.subr.mxu0 0.0
    %147 = vmatpush1.msra.mxu0 0.0
    %148 = vmatprep.subr.mxu0 0.0
    %149 = vmatpush1.msra.mxu0 0.0
    %150 = vmatprep.subr.mxu0 0.0
    %151 = vmatpush1.msra.mxu0 0.0
    %152 = vmatprep.subr.mxu0 0.0
    %153 = vmatpush1.msra.mxu0 0.0
    %154 = vmatprep.subr.mxu0 0.0
    %155 = vmatpush1.msra.mxu0 0.0
    %156 = vmatprep.subr.mxu0 0.0
    %157 = vmatpush1.msra.mxu0 0.0
    %158 = vmatprep.subr.mxu0 0.0
    %159 = vmatpush1.msra.mxu0 0.0
    %160 = vmatprep.subr.mxu0 0.0
    %161 = vmatpush1.msra.mxu0 0.0
    %162 = vmatprep.subr.mxu0 0.0
    %163 = vmatpush1.msra.mxu0 0.0
    %164 = vmatprep.subr.mxu0 0.0
    %165 = vmatpush1.msra.mxu0 0.0
    %166 = vmatprep.subr.mxu0 0.0
    %167 = vmatpush1.msra.mxu0 0.0
    %168 = vmatprep.subr.mxu0 0.0
    %169 = vmatpush1.msra.mxu0 0.0
    %170 = vmatprep.subr.mxu0 0.0
    %171 = vmatpush1.msra.mxu0 0.0
    %172 = vmatprep.subr.mxu0 0.0
    %173 = vmatpush1.msra.mxu0 0.0
    %174 = vmatprep.subr.mxu0 0.0
    %175 = vmatpush1.msra.mxu0 0.0
    %176 = vmatprep.subr.mxu0 0.0
    %177 = vmatpush1.msra.mxu0 0.0
    %178 = vmatprep.mubr.f32.mxu0 0.0
    %179 = vmatmul.mubr.f32.gmra.mrb[0].mxu0 %v109
    %v180 = vpop.f32.mrb[0].mxu0
    %v181 = vadd.f32 %v106, %v180
    %v182 = vpop.f32.mrb[0].mxu0
    %183 = vdwg.mxu0
    %vm184 = vcmp.ge.f32.partialorder %v181, 0.0
    %v185 = vmul.f32 %v181, 0.01
    %v186 = vsel %vm184, %v181, %v185
    %v188 = vrot.slane %v186, 4
    %189 = vrot.lane.b32.xlu0 %v188, 127
    %v190 = vpop.permute.xlu0 %189
    %192 = vrot.lane.b32.xlu0 %v186, 126
    %v193 = vpop.permute.xlu0 %192
    %195 = vrot.lane.b32.xlu0 %v188, 125
    %v196 = vpop.permute.xlu0 %195
    %198 = vrot.lane.b32.xlu0 %v186, 124
    %v199 = vpop.permute.xlu0 %198
    %v201 = vsel %vm54, %v186, %v190
    %v202 = vsel %vm54, %v193, %v196
    %205 = vrot.lane.b32.xlu0 %v201, 124
    %v206 = vpop.permute.xlu0 %205
    %207 = vrot.lane.b32.xlu0 %v202, 124
    %v208 = vpop.permute.xlu0 %207
    %209 = vrot.lane.b32.xlu0 %v199, 124
    %v210 = vpop.permute.xlu0 %209
    %vm214 = vcmask 130048
    %v215 = vsel %vm214, %v201, %v206
    %v216 = vsel %vm214, %v202, %v208
    %v217 = vsel %vm214, %v199, %v210
    %v218 = vld [vmem:[%s4] sm:$0xf]
    %220 = vset.pattern.permute.xlu0 0
    %221 = vperm.xlu0 %220, %v218
    %v222 = vpop.permute.xlu0 %221
    %v225 = vsel %vm38, %v22, 0
    %v228 = vsel %vm54, %v217, 0
    %230 = vmatprep.subr.mxu0 0.0
    %231 = vmatpush1.msra.mxu0 %v215
    %232 = vmatprep.subr.mxu0 0.0
    %233 = vmatpush1.msra.mxu0 %v216
    %234 = vmatprep.subr.mxu0 0.0
    %235 = vmatpush1.msra.mxu0 %v228
    %236 = vmatprep.subr.mxu0 0.0
    %237 = vmatpush1.msra.mxu0 0.0
    %238 = vmatprep.subr.mxu0 0.0
    %239 = vmatpush1.msra.mxu0 0.0
    %240 = vmatprep.subr.mxu0 0.0
    %241 = vmatpush1.msra.mxu0 0.0
    %242 = vmatprep.subr.mxu0 0.0
    %243 = vmatpush1.msra.mxu0 0.0
    %244 = vmatprep.subr.mxu0 0.0
    %245 = vmatpush1.msra.mxu0 0.0
    %246 = vmatprep.subr.mxu0 0.0
    %247 = vmatpush1.msra.mxu0 0.0
    %248 = vmatprep.subr.mxu0 0.0
    %249 = vmatpush1.msra.mxu0 0.0
    %250 = vmatprep.subr.mxu0 0.0
    %251 = vmatpush1.msra.mxu0 0.0
    %252 = vmatprep.subr.mxu0 0.0
    %253 = vmatpush1.msra.mxu0 0.0
    %254 = vmatprep.subr.mxu0 0.0
    %255 = vmatpush1.msra.mxu0 0.0
    %256 = vmatprep.subr.mxu0 0.0
    %257 = vmatpush1.msra.mxu0 0.0
    %258 = vmatprep.subr.mxu0 0.0
    %259 = vmatpush1.msra.mxu0 0.0
    %260 = vmatprep.subr.mxu0 0.0
    %261 = vmatpush1.msra.mxu0 0.0
    %262 = vmatprep.subr.mxu0 0.0
    %263 = vmatpush1.msra.mxu0 0.0
    %264 = vmatprep.subr.mxu0 0.0
    %265 = vmatpush1.msra.mxu0 0.0
    %266 = vmatprep.subr.mxu0 0.0
    %267 = vmatpush1.msra.mxu0 0.0
    %268 = vmatprep.subr.mxu0 0.0
    %269 = vmatpush1.msra.mxu0 0.0
    %270 = vmatprep.subr.mxu0 0.0
    %271 = vmatpush1.msra.mxu0 0.0
    %272 = vmatprep.subr.mxu0 0.0
    %273 = vmatpush1.msra.mxu0 0.0
    %274 = vmatprep.subr.mxu0 0.0
    %275 = vmatpush1.msra.mxu0 0.0
    %276 = vmatprep.subr.mxu0 0.0
    %277 = vmatpush1.msra.mxu0 0.0
    %278 = vmatprep.subr.mxu0 0.0
    %279 = vmatpush1.msra.mxu0 0.0
    %280 = vmatprep.subr.mxu0 0.0
    %281 = vmatpush1.msra.mxu0 0.0
    %282 = vmatprep.subr.mxu0 0.0
    %283 = vmatpush1.msra.mxu0 0.0
    %284 = vmatprep.subr.mxu0 0.0
    %285 = vmatpush1.msra.mxu0 0.0
    %286 = vmatprep.subr.mxu0 0.0
    %287 = vmatpush1.msra.mxu0 0.0
    %288 = vmatprep.subr.mxu0 0.0
    %289 = vmatpush1.msra.mxu0 0.0
    %290 = vmatprep.subr.mxu0 0.0
    %291 = vmatpush1.msra.mxu0 0.0
    %292 = vmatprep.subr.mxu0 0.0
    %293 = vmatpush1.msra.mxu0 0.0
    %294 = vmatprep.mubr.f32.mxu0 0.0
    %295 = vmatmul.mubr.f32.gmra.mrb[0].mxu0 %v225
    %v296 = vpop.f32.mrb[0].mxu0
    %v297 = vadd.f32 %v222, %v296
    %v298 = vpop.f32.mrb[0].mxu0
    %299 = vdwg.mxu0
    %v300 = vtanh.pop %v297
    %v301 = vsel %vm214, %v300, 0.0
    %302 = vst [vmem:[#allocation2] sm:$0xf] %v301
    %304 = vrot.lane.b32.xlu0 %v300, 112
    %v305 = vpop.permute.xlu0 %304
    %v307 = vsel %vm214, %v305, 0.0
    %s308 = scalar_lea.vmem [#allocation2], 4
    %309 = vst [vmem:[%s308] sm:$0xf] %v307
    // Predicated region
    $region22: #{tpu_custom_call.1} parent=1 // pred_check
      _
    $region23: #{tpu_custom_call.1} parent=1 // pred_check_branch
      %311 = sbr.rel (0) target = $region25
    $region24: #{tpu_custom_call.1} parent=1 // pred_region
      %s313 = ssub.s32 128, 128
      %314 = vsyncadd [#allocation3], %s313
      %s315 = sshll.u32 [#allocation2], 4
      %s316 = int_to_ptr.vmem [resolvable:$true] %s315
      %321 = dma.vmem_to_hbm [thread:$0]  %s316, 128, %s5, [#allocation3], 64, 64, 4
    $region25: #{tpu_custom_call.1} parent=1 // pred_fallthru
      _
    // Predicated region
    $region26: #{tpu_custom_call.1} parent=1 // pred_check
      _
    $region27: #{tpu_custom_call.1} parent=1 // pred_check_branch
      %323 = sbr.rel (0) target = $region29
    $region28: #{tpu_custom_call.1} parent=1 // pred_region
      %324 = dma.done [#allocation3], 128
    $region29: #{tpu_custom_call.1} parent=1 // pred_fallthru
      _
    %325 = vsyncpa [#allocation3], 1

// kernel: tpu_custom_call.1
$region0: #{tpu_custom_call.1}
  #allocation0 [shape = 'u32[]', space=smem, size = 0x4, offset = 0x4, fixed_abs, tag = 'smem constant byte address 0x4 - core index']
  #allocation1 [shape = 'u32[144,128]{1,0:T(1,128)}', space=vmem, size = 0x12000, scoped, tag = 'internal scratch']
  %s0 = inlined_call_operand.vmem [shape: f32[2,4,16], index: 0, kind: input, shape index: {}]
  %s1 = inlined_call_operand.vmem [shape: f32[4,20], index: 1, kind: input, shape index: {}]
  %s2 = inlined_call_operand.vmem [shape: f32[4,1], index: 2, kind: input, shape index: {}]
  %s3 = inlined_call_operand.vmem [shape: f32[4,20], index: 3, kind: input, shape index: {}]
  %s4 = inlined_call_operand.vmem [shape: f32[4,1], index: 4, kind: input, shape index: {}]
  %s5 = inlined_call_operand.hbm [shape: f32[2,4,128], index: 5, kind: output, shape index: {}]
  %s6 = sld [smem:[#allocation0]]
  $region30: #{tpu_custom_call.1} parent=0
    _
  %s8 = ssub.s32 1, %s6
  %s9 = scalar_select 0, %s8, %s6
  $region1: #{tpu_custom_call.1} parent=0
    #allocation2 [shape = 'u8[4096]{0}', space=vmem, size = 0x1000, scoped, tag = 'output window, operand 0, single buffered']
    #allocation3 [shape = 's32[1]{0}', space=sflag, size = 0x4, scoped, tag = 'scoped memory for tpu_custom_call.1']
    %10 = vsyncpa [#allocation3], 0
    // Predicated region
    $region2: #{tpu_custom_call.1} parent=1 // pred_check
      _
    $region3: #{tpu_custom_call.1} parent=1 // pred_check_branch
      %12 = sbr.rel (0) target = $region5
    $region4: #{tpu_custom_call.1} parent=1 // pred_region
      _
    $region5: #{tpu_custom_call.1} parent=1 // pred_fallthru
      _
    // Predicated region
    $region6: #{tpu_custom_call.1} parent=1 // pred_check
      _
    $region7: #{tpu_custom_call.1} parent=1 // pred_check_branch
      %14 = sbr.rel (0) target = $region9
    $region8: #{tpu_custom_call.1} parent=1 // pred_region
      _
    $region9: #{tpu_custom_call.1} parent=1 // pred_fallthru
      _
    // Predicated region
    $region10: #{tpu_custom_call.1} parent=1 // pred_check
      _
    $region11: #{tpu_custom_call.1} parent=1 // pred_check_branch
      %16 = sbr.rel (0) target = $region13
    $region12: #{tpu_custom_call.1} parent=1 // pred_region
      _
    $region13: #{tpu_custom_call.1} parent=1 // pred_fallthru
      _
    // Predicated region
    $region14: #{tpu_custom_call.1} parent=1 // pred_check
      _
    $region15: #{tpu_custom_call.1} parent=1 // pred_check_branch
      %18 = sbr.rel (0) target = $region17
    $region16: #{tpu_custom_call.1} parent=1 // pred_region
      _
    $region17: #{tpu_custom_call.1} parent=1 // pred_fallthru
      _
    // Predicated region
    $region18: #{tpu_custom_call.1} parent=1 // pred_check
      _
    $region19: #{tpu_custom_call.1} parent=1 // pred_check_branch
      %20 = sbr.rel (0) target = $region21
    $region20: #{tpu_custom_call.1} parent=1 // pred_region
      _
    $region21: #{tpu_custom_call.1} parent=1 // pred_fallthru
      _
    %v21 = vld [vmem:[%s1] sm:$0xf]
    %v22 = vld [vmem:[%s3] sm:$0xf]
    %v23 = vld [vmem:[%s0] sm:$0xf]
    %25 = vset.pattern.permute.xlu0 0
    %26 = vperm.xlu0 %25, %v23
    %v27 = vpop.permute.xlu0 %26
    %29 = vset.pattern.permute.xlu0 15
    %30 = vperm.xlu0 %29, %v23
    %v31 = vpop.permute.xlu0 %30
    %33 = vrot.lane.b32.xlu0 %v23, 4
    %v34 = vpop.permute.xlu0 %33
    %vm36 = vcmask 31744
    %v37 = vsel %vm36, %v27, %v34
    %vm38 = vcmask 162816
    %v39 = vsel %vm38, %v37, %v31
    %v41 = vrot.slane %v39, 4
    %42 = vrot.lane.b32.xlu0 %v41, 127
    %v43 = vpop.permute.xlu0 %42
    %45 = vrot.lane.b32.xlu0 %v39, 126
    %v46 = vpop.permute.xlu0 %45
    %48 = vrot.lane.b32.xlu0 %v41, 125
    %v49 = vpop.permute.xlu0 %48
    %51 = vrot.lane.b32.xlu0 %v39, 124
    %v52 = vpop.permute.xlu0 %51
    %vm54 = vcmask 1043456
    %v55 = vsel %vm54, %v39, %v43
    %v56 = vsel %vm54, %v46, %v49
    %s57 = scalar_lea.vmem %s0, 4
    %v58 = vld [vmem:[%s57] sm:$0xf]
    %60 = vset.pattern.permute.xlu0 0
    %61 = vperm.xlu0 %60, %v58
    %v62 = vpop.permute.xlu0 %61
    %64 = vset.pattern.permute.xlu0 15
    %65 = vperm.xlu0 %64, %v58
    %v66 = vpop.permute.xlu0 %65
    %68 = vrot.lane.b32.xlu0 %v58, 4
    %v69 = vpop.permute.xlu0 %68
    %v71 = vsel %vm36, %v62, %v69
    %v72 = vsel %vm38, %v71, %v66
    %v74 = vrot.slane %v72, 4
    %75 = vrot.lane.b32.xlu0 %v74, 127
    %v76 = vpop.permute.xlu0 %75
    %78 = vrot.lane.b32.xlu0 %v72, 126
    %v79 = vpop.permute.xlu0 %78
    %81 = vrot.lane.b32.xlu0 %v74, 125
    %v82 = vpop.permute.xlu0 %81
    %84 = vrot.lane.b32.xlu0 %v72, 124
    %v85 = vpop.permute.xlu0 %84
    %v86 = vsel %vm54, %v72, %v76
    %v87 = vsel %vm54, %v79, %v82
    %90 = vrot.lane.b32.xlu0 %v86, 20
    %v91 = vpop.permute.xlu0 %90
    %92 = vrot.lane.b32.xlu0 %v87, 20
    %v93 = vpop.permute.xlu0 %92
    %94 = vrot.lane.b32.xlu0 %v85, 20
    %v95 = vpop.permute.xlu0 %94
    %v99 = vsel %vm38, %v55, %v91
    %v100 = vsel %vm38, %v56, %v93
    %v101 = vsel %vm38, %v52, %v95
    %v102 = vld [vmem:[%s2] sm:$0xf]
    %104 = vset.pattern.permute.xlu0 0
    %105 = vperm.xlu0 %104, %v102
    %v106 = vpop.permute.xlu0 %105
    %v109 = vsel %vm38, %v21, 0
    %v112 = vsel %vm54, %v101, 0
    %114 = vmatprep.subr.mxu0 0.0
    %115 = vmatpush1.msra.mxu0 %v99
    %116 = vmatprep.subr.mxu0 0.0
    %117 = vmatpush1.msra.mxu0 %v100
    %118 = vmatprep.subr.mxu0 0.0
    %119 = vmatpush1.msra.mxu0 %v112
    %120 = vmatprep.subr.mxu0 0.0
    %121 = vmatpush1.msra.mxu0 0.0
    %122 = vmatprep.subr.mxu0 0.0
    %123 = vmatpush1.msra.mxu0 0.0
    %124 = vmatprep.subr.mxu0 0.0
    %125 = vmatpush1.msra.mxu0 0.0
    %126 = vmatprep.subr.mxu0 0.0
    %127 = vmatpush1.msra.mxu0 0.0
    %128 = vmatprep.subr.mxu0 0.0
    %129 = vmatpush1.msra.mxu0 0.0
    %130 = vmatprep.subr.mxu0 0.0
    %131 = vmatpush1.msra.mxu0 0.0
    %132 = vmatprep.subr.mxu0 0.0
    %133 = vmatpush1.msra.mxu0 0.0
    %134 = vmatprep.subr.mxu0 0.0
    %135 = vmatpush1.msra.mxu0 0.0
    %136 = vmatprep.subr.mxu0 0.0
    %137 = vmatpush1.msra.mxu0 0.0
    %138 = vmatprep.subr.mxu0 0.0
    %139 = vmatpush1.msra.mxu0 0.0
    %140 = vmatprep.subr.mxu0 0.0
    %141 = vmatpush1.msra.mxu0 0.0
    %142 = vmatprep.subr.mxu0 0.0
    %143 = vmatpush1.msra.mxu0 0.0
    %144 = vmatprep.subr.mxu0 0.0
    %145 = vmatpush1.msra.mxu0 0.0
    %146 = vmatprep.subr.mxu0 0.0
    %147 = vmatpush1.msra.mxu0 0.0
    %148 = vmatprep.subr.mxu0 0.0
    %149 = vmatpush1.msra.mxu0 0.0
    %150 = vmatprep.subr.mxu0 0.0
    %151 = vmatpush1.msra.mxu0 0.0
    %152 = vmatprep.subr.mxu0 0.0
    %153 = vmatpush1.msra.mxu0 0.0
    %154 = vmatprep.subr.mxu0 0.0
    %155 = vmatpush1.msra.mxu0 0.0
    %156 = vmatprep.subr.mxu0 0.0
    %157 = vmatpush1.msra.mxu0 0.0
    %158 = vmatprep.subr.mxu0 0.0
    %159 = vmatpush1.msra.mxu0 0.0
    %160 = vmatprep.subr.mxu0 0.0
    %161 = vmatpush1.msra.mxu0 0.0
    %162 = vmatprep.subr.mxu0 0.0
    %163 = vmatpush1.msra.mxu0 0.0
    %164 = vmatprep.subr.mxu0 0.0
    %165 = vmatpush1.msra.mxu0 0.0
    %166 = vmatprep.subr.mxu0 0.0
    %167 = vmatpush1.msra.mxu0 0.0
    %168 = vmatprep.subr.mxu0 0.0
    %169 = vmatpush1.msra.mxu0 0.0
    %170 = vmatprep.subr.mxu0 0.0
    %171 = vmatpush1.msra.mxu0 0.0
    %172 = vmatprep.subr.mxu0 0.0
    %173 = vmatpush1.msra.mxu0 0.0
    %174 = vmatprep.subr.mxu0 0.0
    %175 = vmatpush1.msra.mxu0 0.0
    %176 = vmatprep.subr.mxu0 0.0
    %177 = vmatpush1.msra.mxu0 0.0
    %178 = vmatprep.mubr.f32.mxu0 0.0
    %179 = vmatmul.mubr.f32.gmra.mrb[0].mxu0 %v109
    %v180 = vpop.f32.mrb[0].mxu0
    %v181 = vadd.f32 %v106, %v180
    %v182 = vpop.f32.mrb[0].mxu0
    %183 = vdwg.mxu0
    %vm184 = vcmp.ge.f32.partialorder %v181, 0.0
    %v185 = vmul.f32 %v181, 0.01
    %v186 = vsel %vm184, %v181, %v185
    %v188 = vrot.slane %v186, 4
    %189 = vrot.lane.b32.xlu0 %v188, 127
    %v190 = vpop.permute.xlu0 %189
    %192 = vrot.lane.b32.xlu0 %v186, 126
    %v193 = vpop.permute.xlu0 %192
    %195 = vrot.lane.b32.xlu0 %v188, 125
    %v196 = vpop.permute.xlu0 %195
    %198 = vrot.lane.b32.xlu0 %v186, 124
    %v199 = vpop.permute.xlu0 %198
    %v201 = vsel %vm54, %v186, %v190
    %v202 = vsel %vm54, %v193, %v196
    %205 = vrot.lane.b32.xlu0 %v201, 124
    %v206 = vpop.permute.xlu0 %205
    %207 = vrot.lane.b32.xlu0 %v202, 124
    %v208 = vpop.permute.xlu0 %207
    %209 = vrot.lane.b32.xlu0 %v199, 124
    %v210 = vpop.permute.xlu0 %209
    %vm214 = vcmask 130048
    %v215 = vsel %vm214, %v201, %v206
    %v216 = vsel %vm214, %v202, %v208
    %v217 = vsel %vm214, %v199, %v210
    %v218 = vld [vmem:[%s4] sm:$0xf]
    %220 = vset.pattern.permute.xlu0 0
    %221 = vperm.xlu0 %220, %v218
    %v222 = vpop.permute.xlu0 %221
    %v225 = vsel %vm38, %v22, 0
    %v228 = vsel %vm54, %v217, 0
    %230 = vmatprep.subr.mxu0 0.0
    %231 = vmatpush1.msra.mxu0 %v215
    %232 = vmatprep.subr.mxu0 0.0
    %233 = vmatpush1.msra.mxu0 %v216
    %234 = vmatprep.subr.mxu0 0.0
    %235 = vmatpush1.msra.mxu0 %v228
    %236 = vmatprep.subr.mxu0 0.0
    %237 = vmatpush1.msra.mxu0 0.0
    %238 = vmatprep.subr.mxu0 0.0
    %239 = vmatpush1.msra.mxu0 0.0
    %240 = vmatprep.subr.mxu0 0.0
    %241 = vmatpush1.msra.mxu0 0.0
    %242 = vmatprep.subr.mxu0 0.0
    %243 = vmatpush1.msra.mxu0 0.0
    %244 = vmatprep.subr.mxu0 0.0
    %245 = vmatpush1.msra.mxu0 0.0
    %246 = vmatprep.subr.mxu0 0.0
    %247 = vmatpush1.msra.mxu0 0.0
    %248 = vmatprep.subr.mxu0 0.0
    %249 = vmatpush1.msra.mxu0 0.0
    %250 = vmatprep.subr.mxu0 0.0
    %251 = vmatpush1.msra.mxu0 0.0
    %252 = vmatprep.subr.mxu0 0.0
    %253 = vmatpush1.msra.mxu0 0.0
    %254 = vmatprep.subr.mxu0 0.0
    %255 = vmatpush1.msra.mxu0 0.0
    %256 = vmatprep.subr.mxu0 0.0
    %257 = vmatpush1.msra.mxu0 0.0
    %258 = vmatprep.subr.mxu0 0.0
    %259 = vmatpush1.msra.mxu0 0.0
    %260 = vmatprep.subr.mxu0 0.0
    %261 = vmatpush1.msra.mxu0 0.0
    %262 = vmatprep.subr.mxu0 0.0
    %263 = vmatpush1.msra.mxu0 0.0
    %264 = vmatprep.subr.mxu0 0.0
    %265 = vmatpush1.msra.mxu0 0.0
    %266 = vmatprep.subr.mxu0 0.0
    %267 = vmatpush1.msra.mxu0 0.0
    %268 = vmatprep.subr.mxu0 0.0
    %269 = vmatpush1.msra.mxu0 0.0
    %270 = vmatprep.subr.mxu0 0.0
    %271 = vmatpush1.msra.mxu0 0.0
    %272 = vmatprep.subr.mxu0 0.0
    %273 = vmatpush1.msra.mxu0 0.0
    %274 = vmatprep.subr.mxu0 0.0
    %275 = vmatpush1.msra.mxu0 0.0
    %276 = vmatprep.subr.mxu0 0.0
    %277 = vmatpush1.msra.mxu0 0.0
    %278 = vmatprep.subr.mxu0 0.0
    %279 = vmatpush1.msra.mxu0 0.0
    %280 = vmatprep.subr.mxu0 0.0
    %281 = vmatpush1.msra.mxu0 0.0
    %282 = vmatprep.subr.mxu0 0.0
    %283 = vmatpush1.msra.mxu0 0.0
    %284 = vmatprep.subr.mxu0 0.0
    %285 = vmatpush1.msra.mxu0 0.0
    %286 = vmatprep.subr.mxu0 0.0
    %287 = vmatpush1.msra.mxu0 0.0
    %288 = vmatprep.subr.mxu0 0.0
    %289 = vmatpush1.msra.mxu0 0.0
    %290 = vmatprep.subr.mxu0 0.0
    %291 = vmatpush1.msra.mxu0 0.0
    %292 = vmatprep.subr.mxu0 0.0
    %293 = vmatpush1.msra.mxu0 0.0
    %294 = vmatprep.mubr.f32.mxu0 0.0
    %295 = vmatmul.mubr.f32.gmra.mrb[0].mxu0 %v225
    %v296 = vpop.f32.mrb[0].mxu0
    %v297 = vadd.f32 %v222, %v296
    %v298 = vpop.f32.mrb[0].mxu0
    %299 = vdwg.mxu0
    %v300 = vtanh.pop %v297
    %v301 = vsel %vm214, %v300, 0.0
    %302 = vst [vmem:[#allocation2] sm:$0xf] %v301
    %304 = vrot.lane.b32.xlu0 %v300, 112
    %v305 = vpop.permute.xlu0 %304
    %v307 = vsel %vm214, %v305, 0.0
    %s308 = scalar_lea.vmem [#allocation2], 4
    %309 = vst [vmem:[%s308] sm:$0xf] %v307
    // Predicated region
    $region22: #{tpu_custom_call.1} parent=1 // pred_check
      _
    $region23: #{tpu_custom_call.1} parent=1 // pred_check_branch
      %311 = sbr.rel (0) target = $region25
    $region24: #{tpu_custom_call.1} parent=1 // pred_region
      %s313 = ssub.s32 128, 128
      %314 = vsyncadd [#allocation3], %s313
      %s315 = sshll.u32 [#allocation2], 4
      %s316 = int_to_ptr.vmem [resolvable:$true] %s315
      %321 = dma.vmem_to_hbm [thread:$0]  %s316, 128, %s5, [#allocation3], 64, 64, 4
    $region25: #{tpu_custom_call.1} parent=1 // pred_fallthru
      _
    // Predicated region
    $region26: #{tpu_custom_call.1} parent=1 // pred_check
      _
    $region27: #{tpu_custom_call.1} parent=1 // pred_check_branch
      %323 = sbr.rel (0) target = $region29
    $region28: #{tpu_custom_call.1} parent=1 // pred_region
      %324 = dma.done [#allocation3], 128
    $region29: #{tpu_custom_call.1} parent=1 // pred_fallthru
      _
    %325 = vsyncpa [#allocation3], 1

</llo_original>
